<compile_context>
chip_gen: v7x
topology: tpu7x:2x2x1
jax: 0.10.0
libtpu: 0.0.40
codegen_flags: <defaults>
</compile_context>

<pallas_src>
import functools

import jax
import jax.numpy as jnp
from jax.experimental import pallas as pl
from jax.experimental.pallas import tpu as pltpu


def _adaptive_rmsnorm_kernel(x_ref, gamma_ref, beta_ref, o_ref, *, eps, compute_dtype):
    # x_ref / o_ref: (tile_B, tile_T, D);  gamma_ref / beta_ref: (tile_B, 1, D)
    # Sum-of-squares reduction in f32 (numerics); the f32 upcast is only live
    # for the reduce — the elementwise pass below re-streams the input tile.
    x32 = x_ref[...].astype(jnp.float32)
    sumsq = jnp.sum(x32 * x32, axis=-1, keepdims=True)            # (tile_B, tile_T, 1)
    # F.normalize(x, dim=-1, eps): x / max(||x||_2, eps).  Exact reciprocal to
    # stay within the 1e-5 test tolerance.
    inv = (1.0 / jnp.maximum(jnp.sqrt(sumsq), eps)).astype(compute_dtype)

    x = x_ref[...].astype(compute_dtype)                          # re-read resident tile
    gamma = gamma_ref[...].astype(compute_dtype)                  # (tile_B, 1, D), broadcast over T
    beta = beta_ref[...].astype(compute_dtype)
    o_ref[...] = ((x * inv) * gamma + beta).astype(o_ref.dtype)


def _vmem_capacity_bytes():
    """Physical VMEM of the attached TPU; conservative 64 MiB (v7x) fallback."""
    try:
        return int(getattr(pltpu.get_tpu_info(), "vmem_capacity_bytes", 64 << 20))
    except Exception:
        return 64 << 20


def _choose_tiles(B, T, D, itemsize, vmem_cap):
    """Pick (tile_B, tile_T) so the double-buffered in/out slabs (+ f32
    intermediates for narrow inputs) fit in ~1/3 of physical VMEM."""
    budget = max(vmem_cap // 3, 8 << 20)
    # per-(b,t)-row VMEM cost: in + out, double-buffered, plus f32 headroom when
    # the input is sub-32-bit (the sum-of-squares intermediate).
    row_bytes = D * (4 * itemsize + (4 if itemsize < 4 else 0))
    max_rows = max(budget // max(row_bytes, 1), 8)
    # 128 MiB parts (v5e/v6e) afford 1024-row tiles; 64 MiB (v7x) caps at 512.
    row_cap = 1024 if vmem_cap >= (96 << 20) else 512

    if T * D * itemsize >= (1 << 20) or B == 1:
        # Long sequence: one batch row per step, tile T (multiple of 8 or full).
        tile_b = 1
        tile_t = min(T, row_cap, (max_rows // 8) * 8)
    else:
        # Short sequence: keep T whole, batch several rows per step so each grid
        # step still moves a big DMA.
        tile_b = max(1, min(B, max_rows // max(T, 1), row_cap // max(T, 1)))
        tile_t = T

    # v7x-class chips have 2 TensorCores sharing HBM: make sure the (parallel)
    # grid has enough steps to feed both.
    if vmem_cap < (96 << 20):
        while pl.cdiv(B, tile_b) * pl.cdiv(T, tile_t) < 4:
            if tile_b > 1:
                tile_b = (tile_b + 1) // 2
            elif tile_t < T and tile_t > 8 and tile_t % 16 == 0:
                tile_t //= 2
            elif tile_t == T and T > 8 and T % 16 == 0:
                tile_t = T // 2
            else:
                break
    return tile_b, tile_t


def adaptive_rmsnorm(x, condition, wg, bg, wb, bb, *, eps=1e-5):
    """x: (B, T, D); condition: (B, D); wg/wb: (D, D) torch-Linear layout; bg/bb: (D,)."""
    B, T, D = x.shape
    scale = float(D) ** 0.5

    # Hoisted projections (torch Linear: y = c @ W.T + b) run once per batch in
    # plain XLA; the kernel streams x plus two tiny (B, 1, D) rows.
    # sqrt(D) folded into gamma (touches D elems per batch, not T*D).
    gamma = (((condition @ wg.T) + bg) * scale).astype(jnp.float32).reshape(B, 1, D)
    beta = ((condition @ wb.T) + bb).astype(jnp.float32).reshape(B, 1, D)

    itemsize = jnp.dtype(x.dtype).itemsize
    vmem_cap = _vmem_capacity_bytes()
    tile_b, tile_t = _choose_tiles(B, T, D, itemsize, vmem_cap)
    grid = (pl.cdiv(B, tile_b), pl.cdiv(T, tile_t))

    # bf16 elementwise pass for bf16 inputs (halves vreg/VALU pressure on
    # v6e/v7x); the sum-of-squares reduction stays f32 either way.
    compute_dtype = jnp.bfloat16 if x.dtype == jnp.bfloat16 else jnp.float32

    # VMEM actually needed: double-buffered in+out slabs, f32 intermediate
    # headroom for narrow inputs, gamma/beta rows; +50% margin, capped at HW.
    tile_bytes = tile_b * tile_t * D * itemsize
    f32_headroom = tile_b * tile_t * D * 4 if itemsize < 4 else 0
    need = 4 * tile_bytes + f32_headroom + 4 * tile_b * D * 4
    vmem_limit = int(min(max(need * 3 // 2 + (4 << 20), 16 << 20), vmem_cap))

    cost = pl.CostEstimate(
        flops=4 * B * T * D,
        transcendentals=B * T,
        bytes_accessed=2 * B * T * D * itemsize + 2 * B * D * 4,
    )

    kernel = functools.partial(
        _adaptive_rmsnorm_kernel, eps=eps, compute_dtype=compute_dtype
    )

    # TODO(synk): for D < 128 the output stores are masked (vst.msk); a packed
    # layout folding rows into the lane dim would make them lane-dense.

    return pl.pallas_call(
        kernel,
        out_shape=jax.ShapeDtypeStruct((B, T, D), x.dtype),
        grid_spec=pltpu.PrefetchScalarGridSpec(
            num_scalar_prefetch=0,
            grid=grid,
            in_specs=[
                pl.BlockSpec((tile_b, tile_t, D), lambda b, t: (b, t, 0)),
                pl.BlockSpec((tile_b, 1, D), lambda b, t: (b, 0, 0)),
                pl.BlockSpec((tile_b, 1, D), lambda b, t: (b, 0, 0)),
            ],
            out_specs=pl.BlockSpec((tile_b, tile_t, D), lambda b, t: (b, t, 0)),
        ),
        compiler_params=pltpu.CompilerParams(
            dimension_semantics=("parallel", "parallel"),
            vmem_limit_bytes=vmem_limit,
        ),
        cost_estimate=cost,
    )(x, gamma, beta)


def adaptive_rmsnorm_ref(x, condition, wg, bg, wb, bb, *, eps=1e-5):
    """Pure-JAX reference mirroring the PyTorch forward."""
    D = x.shape[-1]
    scale = float(D) ** 0.5
    norm = jnp.sqrt(jnp.sum(x.astype(jnp.float32) ** 2, axis=-1, keepdims=True))
    normed = x / jnp.maximum(norm, eps) * scale
    gamma = condition @ wg.T + bg
    beta = condition @ wb.T + bb
    return normed * gamma[:, None, :] + beta[:, None, :]


if __name__ == "__main__":
    B, T, D = 2, 8, 32
    key = jax.random.PRNGKey(0)
    kx, kc, kwg, kbg, kwb, kbb = jax.random.split(key, 6)

    x = jax.random.normal(kx, (B, T, D), dtype=jnp.float32)
    condition = jax.random.normal(kc, (B, D), dtype=jnp.float32)

    # Non-trivial deterministic parameters so the projection path is exercised.
    # (The module's own init — wg=0, bg=1, wb=0, bb=0 — is a special case.)
    wg = 0.05 * jax.random.normal(kwg, (D, D), dtype=jnp.float32)
    bg = jnp.ones((D,), dtype=jnp.float32) + 0.05 * jax.random.normal(kbg, (D,), dtype=jnp.float32)
    wb = 0.05 * jax.random.normal(kwb, (D, D), dtype=jnp.float32)
    bb = 0.05 * jax.random.normal(kbb, (D,), dtype=jnp.float32)

    out = adaptive_rmsnorm(x, condition, wg, bg, wb, bb)
    out = jax.block_until_ready(out)

    ref = adaptive_rmsnorm_ref(x, condition, wg, bg, wb, bb)
    assert out.shape == (B, T, D)
    assert jnp.allclose(out, ref, atol=1e-5, rtol=1e-5), "mismatch vs reference"

    print("KERNEL_OK")
</pallas_src>

<mosaic_0001>
module attributes {stable_mosaic.version = 11 : i64} {
  func.func @_adaptive_rmsnorm_kernel(%arg0: i32, %arg1: i32, %arg2: memref<1x8x32xf32, #tpu.memory_space<vmem>>, %arg3: memref<1x1x32xf32, #tpu.memory_space<vmem>>, %arg4: memref<1x1x32xf32, #tpu.memory_space<vmem>>, %arg5: memref<1x8x32xf32, #tpu.memory_space<vmem>>) attributes {dimension_semantics = [#tpu.dimension_semantics<parallel>, #tpu.dimension_semantics<parallel>], iteration_bounds = array<i64: 2, 1>, scalar_prefetch = 0 : i64, scratch_operands = 0 : i64, tpu.core_type = #tpu.core_type<tc>, window_params = [{transform_indices = @transform_0, window_bounds = array<i64: 1, 8, 32>}, {transform_indices = @transform_1, window_bounds = array<i64: 1, 1, 32>}, {transform_indices = @transform_2, window_bounds = array<i64: 1, 1, 32>}, {transform_indices = @transform_3, window_bounds = array<i64: 1, 8, 32>}]} {
    %c0 = arith.constant 0 : index
    %c0_0 = arith.constant 0 : index
    %c0_1 = arith.constant 0 : index
    %0 = vector.load %arg2[%c0, %c0_0, %c0_1] : memref<1x8x32xf32, #tpu.memory_space<vmem>>, vector<1x8x32xf32>
    %1 = arith.mulf %0, %0 : vector<1x8x32xf32>
    %cst = arith.constant dense<0.000000e+00> : vector<1x8xf32>
    %2 = vector.multi_reduction <add>, %1, %cst [2] : vector<1x8x32xf32> to vector<1x8xf32>
    %3 = vector.shape_cast %2 : vector<1x8xf32> to vector<1x8x1xf32>
    %4 = math.sqrt %3 : vector<1x8x1xf32>
    %cst_2 = arith.constant 9.99999974E-6 : f32
    %5 = vector.broadcast %cst_2 : f32 to vector<1x8x1xf32>
    %6 = arith.maximumf %4, %5 : vector<1x8x1xf32>
    %cst_3 = arith.constant 1.000000e+00 : f32
    %7 = vector.broadcast %cst_3 : f32 to vector<1x8x1xf32>
    %8 = arith.divf %7, %6 : vector<1x8x1xf32>
    %c0_4 = arith.constant 0 : index
    %c0_5 = arith.constant 0 : index
    %c0_6 = arith.constant 0 : index
    %9 = vector.load %arg2[%c0_4, %c0_5, %c0_6] : memref<1x8x32xf32, #tpu.memory_space<vmem>>, vector<1x8x32xf32>
    %c0_7 = arith.constant 0 : index
    %c0_8 = arith.constant 0 : index
    %c0_9 = arith.constant 0 : index
    %10 = vector.load %arg3[%c0_7, %c0_8, %c0_9] : memref<1x1x32xf32, #tpu.memory_space<vmem>>, vector<1x1x32xf32>
    %c0_10 = arith.constant 0 : index
    %c0_11 = arith.constant 0 : index
    %c0_12 = arith.constant 0 : index
    %11 = vector.load %arg4[%c0_10, %c0_11, %c0_12] : memref<1x1x32xf32, #tpu.memory_space<vmem>>, vector<1x1x32xf32>
    %12 = vector.broadcast %8 : vector<1x8x1xf32> to vector<1x8x32xf32>
    %13 = arith.mulf %9, %12 : vector<1x8x32xf32>
    %14 = vector.broadcast %10 : vector<1x1x32xf32> to vector<1x8x32xf32>
    %15 = arith.mulf %13, %14 : vector<1x8x32xf32>
    %16 = vector.broadcast %11 : vector<1x1x32xf32> to vector<1x8x32xf32>
    %17 = arith.addf %15, %16 : vector<1x8x32xf32>
    %c0_13 = arith.constant 0 : index
    %c0_14 = arith.constant 0 : index
    %c0_15 = arith.constant 0 : index
    %18 = vector.load %arg5[%c0_13, %c0_14, %c0_15] : memref<1x8x32xf32, #tpu.memory_space<vmem>>, vector<1x8x32xf32>
    tpu.vector_store %arg5[%c0_13, %c0_14, %c0_15], %17 {strides = array<i32>} : memref<1x8x32xf32, #tpu.memory_space<vmem>>, vector<1x8x32xf32>,
    return
  }
  func.func @transform_0(%arg0: i32, %arg1: i32) -> (i32, i32, i32) {
    %c0_i32 = arith.constant 0 : i32
    %c0_i32_0 = arith.constant 0 : i32
    return %arg0, %arg1, %c0_i32 : i32, i32, i32
  }
  func.func @transform_1(%arg0: i32, %arg1: i32) -> (i32, i32, i32) {
    %c0_i32 = arith.constant 0 : i32
    %c0_i32_0 = arith.constant 0 : i32
    %c0_i32_1 = arith.constant 0 : i32
    return %arg0, %c0_i32, %c0_i32_0 : i32, i32, i32
  }
  func.func @transform_2(%arg0: i32, %arg1: i32) -> (i32, i32, i32) {
    %c0_i32 = arith.constant 0 : i32
    %c0_i32_0 = arith.constant 0 : i32
    %c0_i32_1 = arith.constant 0 : i32
    return %arg0, %c0_i32, %c0_i32_0 : i32, i32, i32
  }
  func.func @transform_3(%arg0: i32, %arg1: i32) -> (i32, i32, i32) {
    %c0_i32 = arith.constant 0 : i32
    %c0_i32_0 = arith.constant 0 : i32
    return %arg0, %arg1, %c0_i32 : i32, i32, i32
  }
}

</mosaic_0001>

<llo_original>
// kernel: tpu_custom_call.1
$region0: #{tpu_custom_call.1}
  #allocation0 [shape = 'u32[]', space=smem, size = 0x4, offset = 0x4, fixed_abs, tag = 'smem constant byte address 0x4 - core index']
  #allocation1 [shape = 'u32[144,128]{1,0:T(1,128)}', space=vmem, size = 0x12000, scoped, tag = 'internal scratch']
  %s0 = inlined_call_operand.hbm [shape: f32[2,8,32], index: 0, kind: input, shape index: {}]
  %s1 = inlined_call_operand.vmem [shape: f32[2,1,32], index: 1, kind: input, shape index: {}]
  %s2 = inlined_call_operand.vmem [shape: f32[2,1,32], index: 2, kind: input, shape index: {}]
  %s3 = inlined_call_operand.hbm [shape: f32[2,8,32], index: 3, kind: output, shape index: {}]
  %s4 = sld [smem:[#allocation0]]
  $region49: #{tpu_custom_call.1} parent=0
    _
  %s6 = ssub.s32 1, %s4
  %s7 = scalar_select 0, %s6, %s4
  $region1: #{tpu_custom_call.1} parent=0
    #allocation2 [shape = 'u8[8192]{0}', space=vmem, size = 0x2000, scoped, tag = 'input window, operand 0']
    #allocation3 [shape = 's32[2]{0}', space=sflag, size = 0x8, scoped, tag = 'scoped memory for tpu_custom_call.1']
    #allocation4 [shape = 's32[2]{0}', space=sflag, size = 0x8, scoped, tag = 'scoped memory for tpu_custom_call.1']
    #allocation5 [shape = 'u8[8192]{0}', space=vmem, size = 0x2000, scoped, tag = 'output window, operand 0']
    %8 = vsyncpa [#allocation3], 0
    %s9 = scalar_lea.sflag [#allocation3], 1
    %10 = vsyncpa %s9, 0
    %11 = vsyncpa [#allocation4], 0
    %s12 = scalar_lea.sflag [#allocation4], 1
    %13 = vsyncpa %s12, 0
    loop: start=0, step=1, limit=4
    $region2: #{tpu_custom_call.1} parent=1 // loop_pre_header
      _
    $region3: #{tpu_custom_call.1} parent=1 // loop_header
      %s15 = sphi 0, %s19
      %p16 = scmp.ge.s32.totalorder %s15, 4
      %s22 = sphi 0, %s34
      %s23 = sphi 0, %s30
      %s24 = sphi 0, %s22
      %s25 = sphi 0, %s23
      %s26 = sphi 0, %s24
      %s27 = sphi 0, %s25
      %s39 = sphi 0, %s41
      %s42 = sphi 0, %s39
      %s43 = sphi 0, %s42
      %s59 = sphi 0, %s43
      %s65 = sphi 0, %s67
      %s68 = sphi 0, %s65
      %s69 = sphi 0, %s68
      %s85 = sphi 0, %s69
      %s91 = sphi 0, %s93
      %s94 = sphi 0, %s91
      %s95 = sphi 0, %s94
      %s111 = sphi 0, %s95
      %s119 = sphi 0, %s121
      %s122 = sphi 0, %s119
      %s123 = sphi 0, %s122
      %s139 = sphi 0, %s123
    $region4: #{tpu_custom_call.1} parent=1 // loop_header_branch
      %18 = sbr.rel (%p16) target = $region8
    $region5: #{tpu_custom_call.1} parent=1 // loop_body
      %s20 = ssub.s32 %s15, 1
      %s21 = ssub.s32 %s15, 2
      %s28 = sadd.s32 1, %s23
      %p29 = scmp.ge.s32.totalorder %s28, 1
      %s30 = scalar_select %p29, 0, %s28
      %s31 = sadd.s32 1, %s22
      %s32 = scalar_select %p29, %s31, %s22
      %p33 = scmp.ge.s32.totalorder %s32, 2
      %s34 = scalar_select %p33, 0, %s32
      %s35 = ssub.s32 %s22, %s34
      %s36 = ssub.s32 %s23, %s30
      %s37 = sor.u32 %s35, %s36
      %p38 = scmp.eq.s32.totalorder %s37, 0
      %s40 = sadd.s32 %s39, 1
      %s41 = scalar_select %p38, %s39, %s40
      %p44 = pneg %p38
      %p45 = scmp.eq.s32.totalorder %s15, 1
      %p46 = por %p44, %p45
      %p47 = scmp.ne.s32.totalorder %s39, %s42
      %p48 = scmp.eq.s32.totalorder %s15, 0
      %p49 = por %p47, %p48
      %p50 = scmp.ne.s32.totalorder %s39, %s42
      %p51 = scmp.eq.s32.totalorder %s20, 1
      %p52 = por %p50, %p51
      %p53 = scmp.ne.s32.totalorder %s42, %s43
      %p54 = scmp.eq.s32.totalorder %s20, 0
      %p55 = por %p53, %p54
      %p56 = scmp.ne.s32.totalorder %s42, %s43
      %p57 = scmp.eq.s32.totalorder %s21, 1
      %p58 = por %p56, %p57
      %p60 = scmp.ne.s32.totalorder %s43, %s59
      %p61 = scmp.eq.s32.totalorder %s21, 0
      %p62 = por %p60, %p61
      %s63 = ssub.s32 %s22, %s34
      %p64 = scmp.eq.s32.totalorder %s63, 0
      %s66 = sadd.s32 %s65, 1
      %s67 = scalar_select %p64, %s65, %s66
      %p70 = pneg %p64
      %p71 = scmp.eq.s32.totalorder %s15, 1
      %p72 = por %p70, %p71
      %p73 = scmp.ne.s32.totalorder %s65, %s68
      %p74 = scmp.eq.s32.totalorder %s15, 0
      %p75 = por %p73, %p74
      %p76 = scmp.ne.s32.totalorder %s65, %s68
      %p77 = scmp.eq.s32.totalorder %s20, 1
      %p78 = por %p76, %p77
      %p79 = scmp.ne.s32.totalorder %s68, %s69
      %p80 = scmp.eq.s32.totalorder %s20, 0
      %p81 = por %p79, %p80
      %p82 = scmp.ne.s32.totalorder %s68, %s69
      %p83 = scmp.eq.s32.totalorder %s21, 1
      %p84 = por %p82, %p83
      %p86 = scmp.ne.s32.totalorder %s69, %s85
      %p87 = scmp.eq.s32.totalorder %s21, 0
      %p88 = por %p86, %p87
      %s89 = ssub.s32 %s22, %s34
      %p90 = scmp.eq.s32.totalorder %s89, 0
      %s92 = sadd.s32 %s91, 1
      %s93 = scalar_select %p90, %s91, %s92
      %p96 = pneg %p90
      %p97 = scmp.eq.s32.totalorder %s15, 1
      %p98 = por %p96, %p97
      %p99 = scmp.ne.s32.totalorder %s91, %s94
      %p100 = scmp.eq.s32.totalorder %s15, 0
      %p101 = por %p99, %p100
      %p102 = scmp.ne.s32.totalorder %s91, %s94
      %p103 = scmp.eq.s32.totalorder %s20, 1
      %p104 = por %p102, %p103
      %p105 = scmp.ne.s32.totalorder %s94, %s95
      %p106 = scmp.eq.s32.totalorder %s20, 0
      %p107 = por %p105, %p106
      %p108 = scmp.ne.s32.totalorder %s94, %s95
      %p109 = scmp.eq.s32.totalorder %s21, 1
      %p110 = por %p108, %p109
      %p112 = scmp.ne.s32.totalorder %s95, %s111
      %p113 = scmp.eq.s32.totalorder %s21, 0
      %p114 = por %p112, %p113
      %s115 = ssub.s32 %s22, %s34
      %s116 = ssub.s32 %s23, %s30
      %s117 = sor.u32 %s115, %s116
      %p118 = scmp.eq.s32.totalorder %s117, 0
      %s120 = sadd.s32 %s119, 1
      %s121 = scalar_select %p118, %s119, %s120
      %p124 = pneg %p118
      %p125 = scmp.eq.s32.totalorder %s15, 1
      %p126 = por %p124, %p125
      %p127 = scmp.ne.s32.totalorder %s119, %s122
      %p128 = scmp.eq.s32.totalorder %s15, 0
      %p129 = por %p127, %p128
      %p130 = scmp.ne.s32.totalorder %s119, %s122
      %p131 = scmp.eq.s32.totalorder %s20, 1
      %p132 = por %p130, %p131
      %p133 = scmp.ne.s32.totalorder %s122, %s123
      %p134 = scmp.eq.s32.totalorder %s20, 0
      %p135 = por %p133, %p134
      %p136 = scmp.ne.s32.totalorder %s122, %s123
      %p137 = scmp.eq.s32.totalorder %s21, 1
      %p138 = por %p136, %p137
      %p140 = scmp.ne.s32.totalorder %s123, %s139
      %p141 = scmp.eq.s32.totalorder %s21, 0
      %p142 = por %p140, %p141
      %p143 = scmp.le.s32.totalorder 1, %s15
      %p144 = scmp.lt.s32.totalorder %s15, 3
      %p145 = pnand %p143, %p144
      %p146 = pneg %p145
      // Predicated region
      $region9: #{tpu_custom_call.1} parent=5 // pred_check
        _
      $region10: #{tpu_custom_call.1} parent=5 // pred_check_branch
        %148 = sbr.rel (%p145) target = $region12
      $region11: #{tpu_custom_call.1} parent=5 // pred_region
        %s149 = ssub.s32 %s15, 1
      $region12: #{tpu_custom_call.1} parent=5 // pred_fallthru
        _
      %p150 = scmp.lt.s32.totalorder %s15, 2
      // Predicated region
      $region13: #{tpu_custom_call.1} parent=5 // pred_check
        %p151 = pneg %p150
      $region14: #{tpu_custom_call.1} parent=5 // pred_check_branch
        %153 = sbr.rel (%p151) target = $region16
      $region15: #{tpu_custom_call.1} parent=5 // pred_region
        // Predicated region
        $region17: #{tpu_custom_call.1} parent=15 // pred_check
          %p154 = pneg %p49
        $region18: #{tpu_custom_call.1} parent=15 // pred_check_branch
          %156 = sbr.rel (%p154) target = $region20
        $region19: #{tpu_custom_call.1} parent=15 // pred_region
          %s157 = sand.u32 %s39, 1
          %s158 = scalar_lea.sflag [#allocation3], %s157
          %s159 = sand.u32 %s39, 1
          %s160 = smul.addr %s159, 8
          %s161 = scalar_lea.vmem [#allocation2], %s160
          %s163 = ssub.s32 128, 128
          %164 = vsyncadd %s158, %s163
          %s165 = sadd.s32 %s23, %s22
          %s166 = smul.addr %s165, 128
          %s167 = scalar_lea.hbm %s0, %s166
          %s169 = sshll.u32 %s161, 4
          %s170 = int_to_ptr.vmem [resolvable:$true] %s169
          %172 = dma.hbm_to_vmem [thread:$0]  %s167, 128, %s170, %s158
        $region20: #{tpu_custom_call.1} parent=15 // pred_fallthru
          _
        // Predicated region
        $region21: #{tpu_custom_call.1} parent=15 // pred_check
          %p173 = pneg %p75
        $region22: #{tpu_custom_call.1} parent=15 // pred_check_branch
          %175 = sbr.rel (%p173) target = $region24
        $region23: #{tpu_custom_call.1} parent=15 // pred_region
          %p176 = scmp.lt.s32.totalorder %s22, 1
          %s177 = scalar_select %p176, %s22, 1
          %s178 = scalar_lea.vmem %s1, %s177
        $region24: #{tpu_custom_call.1} parent=15 // pred_fallthru
          _
        // Predicated region
        $region25: #{tpu_custom_call.1} parent=15 // pred_check
          %p179 = pneg %p101
        $region26: #{tpu_custom_call.1} parent=15 // pred_check_branch
          %181 = sbr.rel (%p179) target = $region28
        $region27: #{tpu_custom_call.1} parent=15 // pred_region
          %p182 = scmp.lt.s32.totalorder %s22, 1
          %s183 = scalar_select %p182, %s22, 1
          %s184 = scalar_lea.vmem %s2, %s183
        $region28: #{tpu_custom_call.1} parent=15 // pred_fallthru
          _
      $region16: #{tpu_custom_call.1} parent=5 // pred_fallthru
        _
      %p185 = scmp.le.s32.totalorder 1, %s15
      %p186 = scmp.lt.s32.totalorder %s15, 3
      %p187 = pnand %p185, %p186
      %p188 = pneg %p187
      // Predicated region
      $region29: #{tpu_custom_call.1} parent=5 // pred_check
        _
      $region30: #{tpu_custom_call.1} parent=5 // pred_check_branch
        %190 = sbr.rel (%p187) target = $region32
      $region31: #{tpu_custom_call.1} parent=5 // pred_region
        %s191 = ssub.s32 %s15, 1
        %s192 = sand.u32 %s42, 1
        %s193 = scalar_lea.sflag [#allocation3], %s192
        %s194 = sand.u32 %s42, 1
        %s195 = smul.addr %s194, 8
        %s196 = scalar_lea.vmem [#allocation2], %s195
        // Predicated region
        $region33: #{tpu_custom_call.1} parent=31 // pred_check
          %p197 = pneg %p55
        $region34: #{tpu_custom_call.1} parent=31 // pred_check_branch
          %199 = sbr.rel (%p197) target = $region36
        $region35: #{tpu_custom_call.1} parent=31 // pred_region
          %200 = dma.done %s193, 128
        $region36: #{tpu_custom_call.1} parent=31 // pred_fallthru
          _
        %s201 = sand.u32 %s42, 1
        %s202 = scalar_lea.sflag [#allocation3], %s201
        %s203 = sand.u32 %s42, 1
        %s204 = smul.addr %s203, 8
        %s205 = scalar_lea.vmem [#allocation2], %s204
        %p206 = pneg %p55
        %p207 = pneg %p52
        %p208 = scmp.lt.s32.totalorder %s24, 1
        %s209 = scalar_select %p208, %s24, 1
        %s210 = scalar_lea.vmem %s1, %s209
        %p211 = pneg %p81
        %p212 = pneg %p78
        %p213 = scmp.lt.s32.totalorder %s24, 1
        %s214 = scalar_select %p213, %s24, 1
        %s215 = scalar_lea.vmem %s2, %s214
        %p216 = pneg %p107
        %p217 = pneg %p104
        %p218 = pneg %p135
        %p219 = pneg %p132
        %s220 = sand.u32 %s122, 1
        %s221 = scalar_lea.sflag [#allocation4], %s220
        %s222 = sand.u32 %s122, 1
        %s223 = smul.addr %s222, 8
        %s224 = scalar_lea.vmem [#allocation5], %s223
        %p225 = scmp.lt.s32.totalorder %s24, 1
        %s226 = scalar_select %p225, %s24, 1
        %s227 = scalar_lea.vmem %s1, %s226
        %p228 = scmp.lt.s32.totalorder %s24, 1
        %s229 = scalar_select %p228, %s24, 1
        %s230 = scalar_lea.vmem %s2, %s229
        %v231 = vld [vmem:[%s196] sm:$0xff]
        %v232 = vmul.f32 %v231, %v231
        %vm233 = vcmask 261120
        %v234 = vsel %vm233, %v232, 0.0
        %235 = vadd.xlane.f32.xlu0 %v234
        %v236 = vpop.xlane.xlu0 %235
        %v237 = vrsqrt.pop %v236
        %v238 = vmul.f32 %v236, %v237
        %vm239 = vcmp.eq.f32.partialorder %v236, inf
        %v240 = vsel %vm239, %v236, %v238
        %vm241 = vcmp.eq.f32.partialorder %v236, 0.0
        %v242 = vand.u32 %v236, 2147483648
        %v243 = vsel %vm241, %v242, %v240
        %v244 = vmax.f32 %v243, 1e-05
        %v245 = vrcp.pop %v244
        %v246 = vmul.f32 1.0, %v245
        %v247 = vld [vmem:[%s227] sm:$0x1]
        %v248 = vld [vmem:[%s230] sm:$0x1]
        %v249 = vmul.f32 %v231, %v246
        %v251 = vlaneseq
        %v252 = vshrl.u32 %v251, 7
        %v253 = vsub.s32 0, %v252
        %v254 = vrot.slane %v247, %v253
        %v256 = vmul.f32 %v249, %v254
        %v258 = vlaneseq
        %v259 = vshrl.u32 %v258, 7
        %v260 = vsub.s32 0, %v259
        %v261 = vrot.slane %v248, %v260
        %v263 = vadd.f32 %v256, %v261
        %264 = vst.msk [vmem:[%s224] sm:$0xff] %vm233, %v263
        %s265 = sand.u32 %s122, 1
        %s266 = scalar_lea.sflag [#allocation4], %s265
        %s267 = sand.u32 %s122, 1
        %s268 = smul.addr %s267, 8
        %s269 = scalar_lea.vmem [#allocation5], %s268
        // Predicated region
        $region37: #{tpu_custom_call.1} parent=31 // pred_check
          %p270 = pneg %p132
        $region38: #{tpu_custom_call.1} parent=31 // pred_check_branch
          %272 = sbr.rel (%p270) target = $region40
        $region39: #{tpu_custom_call.1} parent=31 // pred_region
          %s274 = ssub.s32 128, 128
          %275 = vsyncadd %s266, %s274
          %s276 = sadd.s32 %s25, %s24
          %s277 = smul.addr %s276, 128
          %s278 = scalar_lea.hbm %s3, %s277
          %s280 = sshll.u32 %s269, 4
          %s281 = int_to_ptr.vmem [resolvable:$true] %s280
          %283 = dma.vmem_to_hbm [thread:$0]  %s281, 128, %s278, %s266
        $region40: #{tpu_custom_call.1} parent=31 // pred_fallthru
          _
      $region32: #{tpu_custom_call.1} parent=5 // pred_fallthru
        _
      %p284 = scmp.le.s32.totalorder 2, %s15
      // Predicated region
      $region41: #{tpu_custom_call.1} parent=5 // pred_check
        %p285 = pneg %p284
      $region42: #{tpu_custom_call.1} parent=5 // pred_check_branch
        %287 = sbr.rel (%p285) target = $region44
      $region43: #{tpu_custom_call.1} parent=5 // pred_region
        %s288 = ssub.s32 %s15, 2
        // Predicated region
        $region45: #{tpu_custom_call.1} parent=43 // pred_check
          %p289 = pneg %p138
        $region46: #{tpu_custom_call.1} parent=43 // pred_check_branch
          %291 = sbr.rel (%p289) target = $region48
        $region47: #{tpu_custom_call.1} parent=43 // pred_region
          %s292 = sand.u32 %s123, 1
          %s293 = scalar_lea.sflag [#allocation4], %s292
          %s294 = sand.u32 %s123, 1
          %s295 = smul.addr %s294, 8
          %s296 = scalar_lea.vmem [#allocation5], %s295
          %297 = dma.done %s293, 128
        $region48: #{tpu_custom_call.1} parent=43 // pred_fallthru
          _
      $region44: #{tpu_custom_call.1} parent=5 // pred_fallthru
        _
    $region6: #{tpu_custom_call.1} parent=1 // loop_footer
      %s19 = sadd.s32 1, %s15
    $region7: #{tpu_custom_call.1} parent=1 // loop_footer_branch
      %14 = sbr.rel target = $region3
    $region8: #{tpu_custom_call.1} parent=1 // loop_exit
      _
    %298 = vsyncpa [#allocation3], 1
    %s299 = scalar_lea.sflag [#allocation3], 1
    %300 = vsyncpa %s299, 1
    %301 = vsyncpa [#allocation4], 1
    %s302 = scalar_lea.sflag [#allocation4], 1
    %303 = vsyncpa %s302, 1

</llo_original>
